<compile_context>
chip_gen: v7x
topology: tpu7x:2x2x1
jax: 0.10.0
libtpu: 0.0.40
codegen_flags: <defaults>
</compile_context>

<pallas_src>
import jax
import jax.numpy as jnp
from jax.experimental import pallas as pl
from jax.experimental.pallas import tpu as pltpu

INF = 1.0 * 1000000000000.0


def _round_up(x, m):
    return -(-x // m) * m


# ---------------------------------------------------------------------------
# Kernels
# ---------------------------------------------------------------------------
def _word_att_kernel(x_ref, m_ref, w_ref, b_ref, xw_ref, aw_ref):
    # x_ref : (BT, S, F)  inputs block, native dtype
    # m_ref : (BT, S)     float mask, lane-dense (1.0 = keep, 0.0 = mask out)
    # w_ref : (1, F)      Linear(F, 1) weight row (resident, index-constant), f32
    # b_ref : (1,)        Linear bias, SMEM scalar
    # xw_ref: (BT, F)     weighted-sum output (dense)
    # aw_ref: (BT, S)     attention-weight output (lane-dense)
    w = w_ref[0, :].astype(jnp.float32)                    # (F,)
    b = b_ref[0]

    # Linear(F, 1): VPU multiply + cross-lane (XLU) reduce over F. No MXU.
    score = jnp.sum(x_ref[...].astype(jnp.float32) * w, axis=-1) + b   # (BT, S)

    # mask: single select instead of score*m + (-INF)*(1-m) (same result for 0/1 masks)
    score = jnp.where(m_ref[...] != 0, score, -INF)

    # softmax over the sequence axis (dim=1 of the original (B, S, 1) tensor)
    smax = jnp.max(score, axis=-1, keepdims=True)           # (BT, 1)
    e = jnp.exp(score - smax)                               # (BT, S)
    denom = jnp.sum(e, axis=-1, keepdims=True)              # (BT, 1)
    att = e * (1.0 / denom)                                 # (BT, S) f32
    aw_ref[...] = att.astype(aw_ref.dtype)

    # weighted sum over S; second x_ref load keeps live ranges short.
    xw = jnp.sum(x_ref[...].astype(jnp.float32) * att[:, :, None], axis=1)  # (BT, F)
    xw_ref[...] = xw.astype(xw_ref.dtype)


def _word_att_kernel_nomask(x_ref, w_ref, b_ref, xw_ref, aw_ref):
    # Same as above, mask=None path (no mask tensor streamed through HBM).
    w = w_ref[0, :].astype(jnp.float32)
    b = b_ref[0]

    score = jnp.sum(x_ref[...].astype(jnp.float32) * w, axis=-1) + b    # (BT, S)

    smax = jnp.max(score, axis=-1, keepdims=True)
    e = jnp.exp(score - smax)
    denom = jnp.sum(e, axis=-1, keepdims=True)
    att = e * (1.0 / denom)
    aw_ref[...] = att.astype(aw_ref.dtype)

    xw = jnp.sum(x_ref[...].astype(jnp.float32) * att[:, :, None], axis=1)
    xw_ref[...] = xw.astype(xw_ref.dtype)


# ---------------------------------------------------------------------------
# Tiling / VMEM sizing
# ---------------------------------------------------------------------------
def _vmem_params():
    """(batch-tile VMEM budget, vmem_limit_bytes) sized per TPU generation."""
    cap = None
    try:
        cap = getattr(pltpu.get_tpu_info(), "vmem_capacity_bytes", None)
    except Exception:
        cap = None
    if cap is not None and cap >= 96 * 1024 * 1024:
        # v5e / v6e: 128 MiB physical VMEM -> use it.
        return 56 * 1024 * 1024, 96 * 1024 * 1024
    # v7x (64 MiB physical) or unknown: stay conservative.
    return 28 * 1024 * 1024, 48 * 1024 * 1024


def _choose_batch_tile(B, S, F, in_bytes, out_bytes, vmem_budget_bytes, has_mask):
    """Batch block BT such that the double-buffered working set fits the budget,
    blocks stay (8,128)-dense, and the grid keeps >= ~4 steps when B allows."""
    sp = _round_up(S, 8)      # sublane-padded S for the 3-D x tile
    fl = _round_up(F, 128)    # lane-padded F
    sl = _round_up(S, 128)    # lane-padded S for the 2-D mask / att_weight tiles
    per_elem = (
        2 * sp * fl * in_bytes            # x tile, double-buffered
        + sp * fl * 4                     # in-kernel f32 working slab
        + (2 * sl * 4 if has_mask else 0) # mask tile, double-buffered
        + 2 * sl * out_bytes              # att_weight tile, double-buffered
        + 2 * fl * out_bytes              # x_weighted tile, double-buffered
    )
    fixed = 2 * fl * 4                    # resident weight tile
    bt = max(1, int((vmem_budget_bytes - fixed) // max(1, per_elem)))
    # keep >= ~4 grid steps so the pipeline has DMA/compute to overlap
    # (and both v7x TensorCores get blocks); keep bt a multiple of 8.
    bt = min(bt, max(8, _round_up(_round_up(B, 4) // 4, 8)))
    if bt >= B:
        return B
    return max(8, (bt // 8) * 8)


# ---------------------------------------------------------------------------
# Wrapper
# ---------------------------------------------------------------------------
def word_att_v2(inputs, weight, bias, mask=None):
    """inputs: (B, S, F); weight: (1, F) (torch Linear layout); bias: (1,).
    mask: optional (B, S). Returns (x_weighted (B, F), att_weight (B, S, 1)),
    both in inputs.dtype (accumulation is f32 inside the kernel)."""
    B, S, F = inputs.shape
    out_dtype = inputs.dtype

    w = weight.astype(jnp.float32).reshape(1, F)   # resident VMEM row
    b = bias.astype(jnp.float32).reshape(1)        # SMEM scalar

    in_bytes = jnp.dtype(inputs.dtype).itemsize
    out_bytes = jnp.dtype(out_dtype).itemsize
    budget, vmem_limit = _vmem_params()
    bt = _choose_batch_tile(B, S, F, in_bytes, out_bytes, budget, mask is not None)
    grid = (pl.cdiv(B, bt),)   # ragged tail handled by Pallas boundary blocks

    x_spec = pl.BlockSpec((bt, S, F), lambda i: (i, 0, 0))
    w_spec = pl.BlockSpec((1, F), lambda i: (0, 0))
    b_spec = pl.BlockSpec(memory_space=pltpu.MemorySpace.SMEM)
    xw_spec = pl.BlockSpec((bt, F), lambda i: (i, 0))
    aw_spec = pl.BlockSpec((bt, S), lambda i: (i, 0))

    out_shape = (
        jax.ShapeDtypeStruct((B, F), out_dtype),   # x_weighted (dense)
        jax.ShapeDtypeStruct((B, S), out_dtype),   # att_weight (lane-dense)
    )
    cparams = pltpu.CompilerParams(
        dimension_semantics=("parallel",),         # batch axis is independent
        vmem_limit_bytes=vmem_limit,
    )

    if mask is None:
        xw, aw2d = pl.pallas_call(
            _word_att_kernel_nomask,
            out_shape=out_shape,
            grid_spec=pltpu.PrefetchScalarGridSpec(
                num_scalar_prefetch=0,
                grid=grid,
                in_specs=[x_spec, w_spec, b_spec],
                out_specs=[xw_spec, aw_spec],
            ),
            compiler_params=cparams,
        )(inputs, w, b)
    else:
        m = mask.astype(jnp.float32).reshape(B, S)     # lane-dense 2-D mask
        m_spec = pl.BlockSpec((bt, S), lambda i: (i, 0))
        xw, aw2d = pl.pallas_call(
            _word_att_kernel,
            out_shape=out_shape,
            grid_spec=pltpu.PrefetchScalarGridSpec(
                num_scalar_prefetch=0,
                grid=grid,
                in_specs=[x_spec, m_spec, w_spec, b_spec],
                out_specs=[xw_spec, aw_spec],
            ),
            compiler_params=cparams,
        )(inputs, m, w, b)

    # match PyTorch's (B, S, 1) att_weight shape (free reshape in the wrapper)
    return xw, aw2d.reshape(B, S, 1)


# ---------------------------------------------------------------------------
# Pure-JAX reference (mirrors the PyTorch math, elementwise to avoid MXU
# default-precision differences on TPU)
# ---------------------------------------------------------------------------
def _reference(inputs, weight, bias, mask=None):
    x = inputs.astype(jnp.float32)
    score = jnp.sum(x * weight.reshape(1, 1, -1), axis=-1, keepdims=True) + bias  # (B,S,1)
    if mask is not None:
        mm = mask.astype(jnp.float32)[..., None]
        score = score * mm + (-INF) * (1.0 - mm)
    att = jax.nn.softmax(score, axis=1)
    xw = jnp.sum(x * att, axis=1)
    return xw.astype(inputs.dtype), att.astype(inputs.dtype)


if __name__ == "__main__":
    key = jax.random.PRNGKey(0)
    B, S, F = 2, 8, 32  # batch, seq, fea_size

    k1, k2, k3, k4 = jax.random.split(key, 4)
    inputs = jax.random.normal(k1, (B, S, F), dtype=jnp.float32)
    # deterministic parameter init (shapes from nn.Linear(fea_size, 1))
    weight = jax.random.normal(k2, (1, F), dtype=jnp.float32) * 0.1
    bias = jax.random.normal(k3, (1,), dtype=jnp.float32) * 0.1
    # mask: keep a random subset of tokens, at least one valid token per row
    mask = (jax.random.uniform(k4, (B, S)) > 0.3).astype(jnp.float32)
    mask = mask.at[:, 0].set(1.0)

    xw, aw = word_att_v2(inputs, weight, bias, mask)
    jax.block_until_ready((xw, aw))

    xw_ref, aw_ref = _reference(inputs, weight, bias, mask)
    assert jnp.allclose(xw, xw_ref, atol=1e-5, rtol=1e-5), "x_weighted mismatch"
    assert jnp.allclose(aw, aw_ref, atol=1e-5, rtol=1e-5), "att_weight mismatch"

    # also exercise the mask=None path (separate no-mask kernel)
    xw2, aw2 = word_att_v2(inputs, weight, bias, None)
    jax.block_until_ready((xw2, aw2))
    xw2_ref, aw2_ref = _reference(inputs, weight, bias, None)
    assert jnp.allclose(xw2, xw2_ref, atol=1e-5, rtol=1e-5), "x_weighted mismatch (no mask)"
    assert jnp.allclose(aw2, aw2_ref, atol=1e-5, rtol=1e-5), "att_weight mismatch (no mask)"

    print("KERNEL_OK")
</pallas_src>

<mosaic_0001>
module attributes {stable_mosaic.version = 11 : i64} {
  func.func @_word_att_kernel(%arg0: i32, %arg1: memref<2x8x32xf32, #tpu.memory_space<vmem>>, %arg2: memref<2x8xf32, #tpu.memory_space<vmem>>, %arg3: memref<1x32xf32, #tpu.memory_space<vmem>>, %arg4: memref<1xf32, #tpu.memory_space<smem>>, %arg5: memref<2x32xf32, #tpu.memory_space<vmem>>, %arg6: memref<2x8xf32, #tpu.memory_space<vmem>>) attributes {dimension_semantics = [#tpu.dimension_semantics<parallel>], iteration_bounds = array<i64: 1>, scalar_prefetch = 0 : i64, scratch_operands = 0 : i64, tpu.core_type = #tpu.core_type<tc>, window_params = [{transform_indices = @transform_0, window_bounds = array<i64: 2, 8, 32>}, {transform_indices = @transform_1, window_bounds = array<i64: 2, 8>}, {pipeline_mode = #tpu.pipeline_mode<synchronous>, transform_indices = @transform_2, window_bounds = array<i64: 1, 32>}, {transform_indices = @transform_3, window_bounds = array<i64: 1>}, {transform_indices = @transform_4, window_bounds = array<i64: 2, 32>}, {transform_indices = @transform_5, window_bounds = array<i64: 2, 8>}]} {
    %c0 = arith.constant 0 : index
    %c0_0 = arith.constant 0 : index
    %0 = vector.load %arg3[%c0, %c0_0] : memref<1x32xf32, #tpu.memory_space<vmem>>, vector<1x32xf32>
    %1 = vector.shape_cast %0 : vector<1x32xf32> to vector<32xf32>
    %c0_1 = arith.constant 0 : index
    %2 = memref.load %arg4[%c0_1] : memref<1xf32, #tpu.memory_space<smem>>
    %c0_2 = arith.constant 0 : index
    %c0_3 = arith.constant 0 : index
    %c0_4 = arith.constant 0 : index
    %3 = vector.load %arg1[%c0_2, %c0_3, %c0_4] : memref<2x8x32xf32, #tpu.memory_space<vmem>>, vector<2x8x32xf32>
    %4 = vector.shape_cast %1 : vector<32xf32> to vector<1x1x32xf32>
    %5 = vector.broadcast %4 : vector<1x1x32xf32> to vector<2x8x32xf32>
    %6 = arith.mulf %3, %5 : vector<2x8x32xf32>
    %cst = arith.constant dense<0.000000e+00> : vector<2x8xf32>
    %7 = vector.multi_reduction <add>, %6, %cst [2] : vector<2x8x32xf32> to vector<2x8xf32>
    %8 = vector.broadcast %2 : f32 to vector<2x8xf32>
    %9 = arith.addf %7, %8 : vector<2x8xf32>
    %c0_5 = arith.constant 0 : index
    %c0_6 = arith.constant 0 : index
    %10 = vector.load %arg2[%c0_5, %c0_6] : memref<2x8xf32, #tpu.memory_space<vmem>>, vector<2x8xf32>
    %cst_7 = arith.constant 0.000000e+00 : f32
    %11 = vector.broadcast %cst_7 : f32 to vector<2x8xf32>
    %12 = arith.cmpf one, %10, %11 : vector<2x8xf32>
    %cst_8 = arith.constant -9.99999995E+11 : f32
    %13 = vector.broadcast %cst_8 : f32 to vector<2x8xf32>
    %14 = arith.select %12, %9, %13 : vector<2x8xi1>, vector<2x8xf32>
    %cst_9 = arith.constant dense<0xFF800000> : vector<2xf32>
    %15 = vector.multi_reduction <maximumf>, %14, %cst_9 [1] : vector<2x8xf32> to vector<2xf32>
    %16 = vector.shape_cast %15 : vector<2xf32> to vector<2x1xf32>
    %17 = vector.broadcast %16 : vector<2x1xf32> to vector<2x8xf32>
    %18 = arith.subf %14, %17 : vector<2x8xf32>
    %19 = math.exp %18 : vector<2x8xf32>
    %cst_10 = arith.constant dense<0.000000e+00> : vector<2xf32>
    %20 = vector.multi_reduction <add>, %19, %cst_10 [1] : vector<2x8xf32> to vector<2xf32>
    %21 = vector.shape_cast %20 : vector<2xf32> to vector<2x1xf32>
    %cst_11 = arith.constant 1.000000e+00 : f32
    %22 = vector.broadcast %cst_11 : f32 to vector<2x1xf32>
    %23 = arith.divf %22, %21 : vector<2x1xf32>
    %24 = vector.broadcast %23 : vector<2x1xf32> to vector<2x8xf32>
    %25 = arith.mulf %19, %24 : vector<2x8xf32>
    %c0_12 = arith.constant 0 : index
    %c0_13 = arith.constant 0 : index
    %26 = vector.load %arg6[%c0_12, %c0_13] : memref<2x8xf32, #tpu.memory_space<vmem>>, vector<2x8xf32>
    tpu.vector_store %arg6[%c0_12, %c0_13], %25 {strides = array<i32>} : memref<2x8xf32, #tpu.memory_space<vmem>>, vector<2x8xf32>,
    %c0_14 = arith.constant 0 : index
    %c0_15 = arith.constant 0 : index
    %c0_16 = arith.constant 0 : index
    %27 = vector.load %arg1[%c0_14, %c0_15, %c0_16] : memref<2x8x32xf32, #tpu.memory_space<vmem>>, vector<2x8x32xf32>
    %28 = vector.shape_cast %25 : vector<2x8xf32> to vector<2x8x1xf32>
    %29 = vector.broadcast %28 : vector<2x8x1xf32> to vector<2x8x32xf32>
    %30 = arith.mulf %27, %29 : vector<2x8x32xf32>
    %cst_17 = arith.constant dense<0.000000e+00> : vector<2x32xf32>
    %31 = vector.multi_reduction <add>, %30, %cst_17 [1] : vector<2x8x32xf32> to vector<2x32xf32>
    %c0_18 = arith.constant 0 : index
    %c0_19 = arith.constant 0 : index
    %32 = vector.load %arg5[%c0_18, %c0_19] : memref<2x32xf32, #tpu.memory_space<vmem>>, vector<2x32xf32>
    tpu.vector_store %arg5[%c0_18, %c0_19], %31 {strides = array<i32>} : memref<2x32xf32, #tpu.memory_space<vmem>>, vector<2x32xf32>,
    return
  }
  func.func @transform_0(%arg0: i32) -> (i32, i32, i32) {
    %c0_i32 = arith.constant 0 : i32
    %c0_i32_0 = arith.constant 0 : i32
    %c0_i32_1 = arith.constant 0 : i32
    return %arg0, %c0_i32, %c0_i32_0 : i32, i32, i32
  }
  func.func @transform_1(%arg0: i32) -> (i32, i32) {
    %c0_i32 = arith.constant 0 : i32
    %c0_i32_0 = arith.constant 0 : i32
    return %arg0, %c0_i32 : i32, i32
  }
  func.func @transform_2(%arg0: i32) -> (i32, i32) {
    %c0_i32 = arith.constant 0 : i32
    %c0_i32_0 = arith.constant 0 : i32
    %c0_i32_1 = arith.constant 0 : i32
    return %c0_i32, %c0_i32_0 : i32, i32
  }
  func.func @transform_3(%arg0: i32) -> i32 {
    %c0_i32 = arith.constant 0 : i32
    %c0_i32_0 = arith.constant 0 : i32
    return %c0_i32 : i32
  }
  func.func @transform_4(%arg0: i32) -> (i32, i32) {
    %c0_i32 = arith.constant 0 : i32
    %c0_i32_0 = arith.constant 0 : i32
    return %arg0, %c0_i32 : i32, i32
  }
  func.func @transform_5(%arg0: i32) -> (i32, i32) {
    %c0_i32 = arith.constant 0 : i32
    %c0_i32_0 = arith.constant 0 : i32
    return %arg0, %c0_i32 : i32, i32
  }
}

</mosaic_0001>

<llo_original>
// kernel: tpu_custom_call.1
$region0: #{tpu_custom_call.1}
  #allocation0 [shape = 'u32[]', space=smem, size = 0x4, offset = 0x4, fixed_abs, tag = 'smem constant byte address 0x4 - core index']
  #allocation1 [shape = 'u32[144,128]{1,0:T(1,128)}', space=vmem, size = 0x12000, scoped, tag = 'internal scratch']
  #allocation2 [shape = 'f32[1]{0:T(128)S(6)}', space=smem, size = 0x200, scoped, tag = 'scoped memory for tpu_custom_call.1']
  %s0 = inlined_call_operand.hbm [shape: f32[2,8,32], index: 0, kind: input, shape index: {}]
  %s1 = inlined_call_operand.vmem [shape: f32[2,8], index: 1, kind: input, shape index: {}]
  %s2 = inlined_call_operand.vmem [shape: f32[1,32], index: 2, kind: input, shape index: {}]
  %s3 = inlined_call_operand.<no memory space> [shape: f32[1], index: 3, kind: input, shape index: {}]
  %s4 = inlined_call_operand.hbm [shape: f32[2,32], index: 4, kind: output, shape index: {0}]
  %s5 = inlined_call_operand.hbm [shape: f32[2,8], index: 5, kind: output, shape index: {1}]
  %6 = xla_tuple %s4, %s5
  %s7 = sld [smem:[#allocation0]]
  $region38: #{tpu_custom_call.1} parent=0
    _
  %s9 = ssub.s32 1, %s7
  %s10 = scalar_select 0, %s9, %s7
  %11 = sst [smem:[#allocation2]] %s3
  $region1: #{tpu_custom_call.1} parent=0
    #allocation3 [shape = 'u8[8192]{0}', space=vmem, size = 0x2000, scoped, tag = 'input window, operand 0, single buffered']
    #allocation4 [shape = 's32[1]{0}', space=sflag, size = 0x4, scoped, tag = 'scoped memory for tpu_custom_call.1']
    #allocation5 [shape = 's32[1]{0}', space=sflag, size = 0x4, scoped, tag = 'scoped memory for tpu_custom_call.1']
    #allocation6 [shape = 'u8[1024]{0}', space=vmem, size = 0x400, scoped, tag = 'output window, operand 0, single buffered']
    #allocation7 [shape = 'u8[1024]{0}', space=vmem, size = 0x400, scoped, tag = 'output window, operand 1, single buffered']
    #allocation8 [shape = 's32[1]{0}', space=sflag, size = 0x4, scoped, tag = 'scoped memory for tpu_custom_call.1']
    %12 = vsyncpa [#allocation4], 0
    %13 = vsyncpa [#allocation5], 0
    %14 = vsyncpa [#allocation8], 0
    // Predicated region
    $region2: #{tpu_custom_call.1} parent=1 // pred_check
      _
    $region3: #{tpu_custom_call.1} parent=1 // pred_check_branch
      %16 = sbr.rel (0) target = $region5
    $region4: #{tpu_custom_call.1} parent=1 // pred_region
      %s18 = ssub.s32 256, 256
      %19 = vsyncadd [#allocation4], %s18
      %s20 = sshll.u32 [#allocation3], 4
      %s21 = int_to_ptr.vmem [resolvable:$true] %s20
      %26 = dma.hbm_to_vmem [thread:$0]  %s0, 256, %s21, [#allocation4], 128, 128, 8
    $region5: #{tpu_custom_call.1} parent=1 // pred_fallthru
      _
    // Predicated region
    $region6: #{tpu_custom_call.1} parent=1 // pred_check
      _
    $region7: #{tpu_custom_call.1} parent=1 // pred_check_branch
      %28 = sbr.rel (0) target = $region9
    $region8: #{tpu_custom_call.1} parent=1 // pred_region
      _
    $region9: #{tpu_custom_call.1} parent=1 // pred_fallthru
      _
    // Predicated region
    $region10: #{tpu_custom_call.1} parent=1 // pred_check
      _
    $region11: #{tpu_custom_call.1} parent=1 // pred_check_branch
      %30 = sbr.rel (0) target = $region13
    $region12: #{tpu_custom_call.1} parent=1 // pred_region
      _
    $region13: #{tpu_custom_call.1} parent=1 // pred_fallthru
      _
    // Predicated region
    $region14: #{tpu_custom_call.1} parent=1 // pred_check
      _
    $region15: #{tpu_custom_call.1} parent=1 // pred_check_branch
      %32 = sbr.rel (0) target = $region17
    $region16: #{tpu_custom_call.1} parent=1 // pred_region
      _
    $region17: #{tpu_custom_call.1} parent=1 // pred_fallthru
      _
    // Predicated region
    $region18: #{tpu_custom_call.1} parent=1 // pred_check
      _
    $region19: #{tpu_custom_call.1} parent=1 // pred_check_branch
      %34 = sbr.rel (0) target = $region21
    $region20: #{tpu_custom_call.1} parent=1 // pred_region
      %35 = dma.done [#allocation4], 256
    $region21: #{tpu_custom_call.1} parent=1 // pred_fallthru
      _
    %v36 = vld [vmem:[%s2] sm:$0x1]
    %s37 = sld [smem:[#allocation2]]
    %v38 = vld [vmem:[#allocation3] sm:$0xff]
    %v39 = vld [vmem:[#allocation3 + $0x8] sm:$0xff]
    %v41 = vlaneseq
    %v42 = vshrl.u32 %v41, 7
    %v43 = vsub.s32 0, %v42
    %v44 = vrot.slane %v36, %v43
    %v46 = vmul.f32 %v38, %v44
    %v47 = vmul.f32 %v39, %v44
    %vm48 = vcmask 261120
    %v49 = vsel %vm48, %v46, 0.0
    %50 = vadd.xlane.f32.xlu0 %v49
    %v51 = vpop.xlane.xlu0 %50
    %v52 = vsel %vm48, %v47, 0.0
    %53 = vadd.xlane.f32.xlu0 %v52
    %v54 = vpop.xlane.xlu0 %53
    %v55 = vstv %s37
    %v56 = vadd.f32 %v51, %v55
    %v57 = vadd.f32 %v54, %v55
    %v58 = vld [vmem:[%s1] sm:$0x3]
    %vm59 = vcmp.ne.f32.partialorder %v58, 0.0
    %v62 = vlaneseq
    %v63 = vand.u32 %v62, 127
    %v64 = vlaneseq
    %v65 = vshrl.u32 %v64, 7
    %v66 = vsub.s32 %v63, %v65
    %v67 = vrot.slane %v56, %v66
    %v68 = vlaneseq
    %v69 = vshrl.u32 %v68, 7
    %v70 = vsub.s32 %v63, %v69
    %v71 = vrot.slane %v57, %v70
    %vm72 = vcmask 1041409
    %v73 = vsel %vm72, %v71, %v67
    %v75 = vsel %vm59, %v73, -1e+12
    %vm76 = vcmask 58368
    %v77 = vsel %vm76, %v75, -inf
    %78 = vmax.xlane.f32.xlu0 %v77
    %v79 = vpop.xlane.xlu0 %78
    %v80 = vsub.f32 %v75, %v79
    %v81 = vmul.f32 %v80, 1.442695
    %v82 = vpow.pop %v81
    %v83 = vsel %vm76, %v82, 0.0
    %84 = vadd.xlane.f32.xlu0 %v83
    %v85 = vpop.xlane.xlu0 %84
    %v86 = vrcp.pop %v85
    %v87 = vmul.f32 1.0, %v86
    %v88 = vmul.f32 %v82, %v87
    %89 = vst.msk [vmem:[#allocation7] sm:$0x3] %vm76, %v88
    %v90 = vld [vmem:[#allocation3] sm:$0xff]
    %v91 = vld [vmem:[#allocation3 + $0x8] sm:$0xff]
    %v92 = vlaneseq
    %v93 = vshrl.u32 %v92, 7
    %v94 = vsub.s32 0, %v93
    %v95 = vrot.slane %v88, %v94
    %97 = vbcast.lane.b32.xlu0 %v95, 256
    %v98 = vpop.permute.xlu0 %97
    %v99 = vlaneseq
    %v100 = vshrl.u32 %v99, 7
    %v101 = vsub.s32 1, %v100
    %v102 = vrot.slane %v88, %v101
    %104 = vbcast.lane.b32.xlu0 %v102, 256
    %v105 = vpop.permute.xlu0 %104
    %v106 = vmul.f32 %v90, %v98
    %v107 = vmul.f32 %v91, %v105
    %v108 = vsel %vm48, %v106, 0.0
    %v109 = vrot.slane %v108, 4
    %v110 = vadd.f32 %v108, %v109
    %v111 = vrot.slane %v110, 2
    %v112 = vadd.f32 %v110, %v111
    %v113 = vrot.slane %v112, 1
    %v114 = vadd.f32 %v112, %v113
    %v115 = vsel %vm48, %v107, 0.0
    %v116 = vrot.slane %v115, 4
    %v117 = vadd.f32 %v115, %v116
    %v118 = vrot.slane %v117, 2
    %v119 = vadd.f32 %v117, %v118
    %v120 = vrot.slane %v119, 1
    %v121 = vadd.f32 %v119, %v120
    %v124 = vsel %vm72, %v121, %v114
    %vm126 = vcmask 254976
    %127 = vst.msk [vmem:[#allocation6] sm:$0x3] %vm126, %v124
    // Predicated region
    $region22: #{tpu_custom_call.1} parent=1 // pred_check
      _
    $region23: #{tpu_custom_call.1} parent=1 // pred_check_branch
      %129 = sbr.rel (0) target = $region25
    $region24: #{tpu_custom_call.1} parent=1 // pred_region
      %s131 = ssub.s32 32, 32
      %132 = vsyncadd [#allocation5], %s131
      %s134 = sshll.u32 [#allocation6], 4
      %s135 = int_to_ptr.vmem [resolvable:$true] %s134
      %137 = dma.vmem_to_hbm [thread:$0]  %s135, 32, %s4, [#allocation5]
    $region25: #{tpu_custom_call.1} parent=1 // pred_fallthru
      _
    // Predicated region
    $region26: #{tpu_custom_call.1} parent=1 // pred_check
      _
    $region27: #{tpu_custom_call.1} parent=1 // pred_check_branch
      %139 = sbr.rel (0) target = $region29
    $region28: #{tpu_custom_call.1} parent=1 // pred_region
      %s141 = ssub.s32 32, 32
      %142 = vsyncadd [#allocation8], %s141
      %s144 = sshll.u32 [#allocation7], 4
      %s145 = int_to_ptr.vmem [resolvable:$true] %s144
      %147 = dma.vmem_to_hbm [thread:$0]  %s145, 32, %s5, [#allocation8]
    $region29: #{tpu_custom_call.1} parent=1 // pred_fallthru
      _
    // Predicated region
    $region30: #{tpu_custom_call.1} parent=1 // pred_check
      _
    $region31: #{tpu_custom_call.1} parent=1 // pred_check_branch
      %149 = sbr.rel (0) target = $region33
    $region32: #{tpu_custom_call.1} parent=1 // pred_region
      %150 = dma.done [#allocation5], 32
    $region33: #{tpu_custom_call.1} parent=1 // pred_fallthru
      _
    // Predicated region
    $region34: #{tpu_custom_call.1} parent=1 // pred_check
      _
    $region35: #{tpu_custom_call.1} parent=1 // pred_check_branch
      %152 = sbr.rel (0) target = $region37
    $region36: #{tpu_custom_call.1} parent=1 // pred_region
      %153 = dma.done [#allocation8], 32
    $region37: #{tpu_custom_call.1} parent=1 // pred_fallthru
      _
    %154 = vsyncpa [#allocation4], 1
    %155 = vsyncpa [#allocation5], 1
    %156 = vsyncpa [#allocation8], 1

</llo_original>
